<compile_context>
chip_gen: v7x
topology: tpu7x:2x2x1
jax: 0.10.0
libtpu: 0.0.40
codegen_flags: <defaults>
</compile_context>

<pallas_src>
import jax
import jax.numpy as jnp
from jax.experimental import pallas as pl
from jax.experimental.pallas import tpu as pltpu


def _fs_partial_sums_kernel(pred_ref, out_ref, ent_acc, p_acc):
    """Accumulate entropy / probability sums for one core chunk."""
    i = pl.program_id(1)
    j = pl.program_id(2)

    @pl.when((i == 0) & (j == 0))
    def _init():
        ent_acc[...] = jnp.zeros_like(ent_acc)
        p_acc[...] = jnp.zeros_like(p_acc)

    p = pred_ref[...].astype(jnp.float32)

    # Guarded Bernoulli entropy: 2 EUP logs per element, selects are VPU.
    safe_p = jnp.where(p > 0.0, p, 1.0)          # log(1) = 0 when p == 0
    safe_q = jnp.where(p < 1.0, 1.0 - p, 1.0)    # log(1) = 0 when p == 1
    ent = -(p * jnp.log(safe_p) + (1.0 - p) * jnp.log(safe_q))

    # Running elementwise accumulators (pure VPU adds, no per-tile XLU reduce).
    ent_acc[...] += ent
    p_acc[...] += p

    @pl.when((i == pl.num_programs(1) - 1) & (j == pl.num_programs(2) - 1))
    def _finalize():
        ent_sum = jnp.sum(ent_acc[...])
        p_sum = jnp.sum(p_acc[...])
        lane = jax.lax.broadcasted_iota(jnp.int32, (8, 128), 1)
        sub = jax.lax.broadcasted_iota(jnp.int32, (8, 128), 0)
        out_ref[...] = jnp.where(
            (sub == 0) & (lane == 0), ent_sum,
            jnp.where((sub == 0) & (lane == 1), p_sum, 0.0))


def _round_up(x: int, m: int) -> int:
    return ((x + m - 1) // m) * m


def feature_selection_loss_pallas(pred, loss_weight: float = 1.0,
                                  gamma: float = 1.0, *,
                                  block_rows: int = 256,
                                  block_cols: int = 512):
    """Pallas implementation of FeatureSelectionLoss.forward for (B, N) pred.

    Returns (loss, mean_fs) as two scalar float32 values.
    """
    del gamma  # matches reference: forward() never forwards self.gamma
    B, N = pred.shape

    # Block sizes clamped to the (vreg-aligned) problem size.
    bm = min(block_rows, _round_up(B, 8))
    bn = min(block_cols, _round_up(N, 128))
    # Rows are split into 2 parallel core chunks; pad so the grid divides.
    # Zero padding is exact: guarded entropy(0) = 0 and p = 0 add nothing.
    b_pad = _round_up(B, 2 * bm)
    n_pad = _round_up(N, bn)
    if (b_pad, n_pad) != (B, N):
        pred = jnp.pad(pred, ((0, b_pad - B), (0, n_pad - N)))
    gb = b_pad // (2 * bm)   # row blocks per core chunk
    gn = n_pad // bn         # column blocks

    cost = pl.CostEstimate(
        flops=int(7 * B * N),
        transcendentals=int(2 * B * N),
        bytes_accessed=int(pred.dtype.itemsize * b_pad * n_pad + 2 * 8 * 128 * 4),
    )

    # Output: one lane-dense (8, 128) block per core chunk -> (16, 128) total.
    partial = pl.pallas_call(
        _fs_partial_sums_kernel,
        out_shape=jax.ShapeDtypeStruct((16, 128), jnp.float32),
        grid_spec=pltpu.PrefetchScalarGridSpec(
            num_scalar_prefetch=0,
            grid=(2, gb, gn),
            in_specs=[pl.BlockSpec((bm, bn), lambda c, i, j: (c * gb + i, j))],
            out_specs=pl.BlockSpec((8, 128), lambda c, i, j: (c, 0)),
            scratch_shapes=[pltpu.VMEM((bm, bn), jnp.float32),
                            pltpu.VMEM((bm, bn), jnp.float32)],
        ),
        compiler_params=pltpu.CompilerParams(
            dimension_semantics=("parallel", "arbitrary", "arbitrary"),
            vmem_limit_bytes=32 * 1024 * 1024,
        ),
        cost_estimate=cost,
    )(pred)

    # Combine the two per-core partial sums; all scalar factors applied once.
    ent_sum = partial[0, 0] + partial[8, 0]
    p_sum = partial[0, 1] + partial[8, 1]
    inv_total = 1.0 / float(B * N)
    loss = loss_weight * ent_sum * inv_total
    mean_fs = p_sum * inv_total   # reference uses gamma default (= 1.0)
    return loss, mean_fs


if __name__ == "__main__":
    key = jax.random.PRNGKey(0)
    B, N = 2, 100  # small (B, N) input, like the module docstring's (1, 100)
    logits = jax.random.normal(key, (B, N), dtype=jnp.float32)
    pred = jax.nn.sigmoid(logits)  # probabilities in (0, 1)

    loss, mean_fs = feature_selection_loss_pallas(pred, loss_weight=1.0, gamma=1.0)
    loss, mean_fs = jax.block_until_ready((loss, mean_fs))

    # Pure-JAX reference (same math as the PyTorch module).
    p = pred.astype(jnp.float32)
    ent_ref = -(p * jnp.log(p) + (1.0 - p) * jnp.log1p(-p))
    loss_ref = jnp.sum(jnp.mean(ent_ref, axis=1)) / B
    mean_ref = jnp.sum(jnp.mean(p, axis=1)) / B
    assert jnp.allclose(loss, loss_ref, rtol=1e-5, atol=1e-5), (loss, loss_ref)
    assert jnp.allclose(mean_fs, mean_ref, rtol=1e-5, atol=1e-5), (mean_fs, mean_ref)

    print("KERNEL_OK")
</pallas_src>

<mosaic_0001>
module attributes {stable_mosaic.version = 11 : i64} {
  func.func @_fs_partial_sums_kernel(%arg0: i32, %arg1: i32, %arg2: i32, %arg3: memref<8x128xf32, #tpu.memory_space<vmem>>, %arg4: memref<8x128xf32, #tpu.memory_space<vmem>>, %arg5: memref<8x128xf32, #tpu.memory_space<vmem>>, %arg6: memref<8x128xf32, #tpu.memory_space<vmem>>) attributes {dimension_semantics = [#tpu.dimension_semantics<parallel>, #tpu.dimension_semantics<arbitrary>, #tpu.dimension_semantics<arbitrary>], iteration_bounds = array<i64: 2, 1, 1>, scalar_prefetch = 0 : i64, scratch_operands = 2 : i64, tpu.core_type = #tpu.core_type<tc>, window_params = [{transform_indices = @transform_0, window_bounds = array<i64: 8, 128>}, {transform_indices = @transform_1, window_bounds = array<i64: 8, 128>}]} {
    %c0_i32 = arith.constant 0 : i32
    %0 = arith.cmpi eq, %arg1, %c0_i32 : i32
    %c0_i32_0 = arith.constant 0 : i32
    %1 = arith.cmpi eq, %arg2, %c0_i32_0 : i32
    %2 = arith.andi %0, %1 : i1
    %3 = arith.extui %2 : i1 to i32
    %c0_i32_1 = arith.constant 0 : i32
    %4 = arith.cmpi ne, %3, %c0_i32_1 : i32
    scf.if %4 {
      %cst_20 = arith.constant 0.000000e+00 : f32
      %36 = vector.broadcast %cst_20 : f32 to vector<8x128xf32>
      %c0_21 = arith.constant 0 : index
      %c0_22 = arith.constant 0 : index
      %37 = vector.load %arg5[%c0_21, %c0_22] : memref<8x128xf32, #tpu.memory_space<vmem>>, vector<8x128xf32>
      tpu.vector_store %arg5[%c0_21, %c0_22], %36 {strides = array<i32>} : memref<8x128xf32, #tpu.memory_space<vmem>>, vector<8x128xf32>,
      %cst_23 = arith.constant 0.000000e+00 : f32
      %38 = vector.broadcast %cst_23 : f32 to vector<8x128xf32>
      %c0_24 = arith.constant 0 : index
      %c0_25 = arith.constant 0 : index
      %39 = vector.load %arg6[%c0_24, %c0_25] : memref<8x128xf32, #tpu.memory_space<vmem>>, vector<8x128xf32>
      tpu.vector_store %arg6[%c0_24, %c0_25], %38 {strides = array<i32>} : memref<8x128xf32, #tpu.memory_space<vmem>>, vector<8x128xf32>,
    } else {
    }
    %c0 = arith.constant 0 : index
    %c0_2 = arith.constant 0 : index
    %5 = vector.load %arg3[%c0, %c0_2] : memref<8x128xf32, #tpu.memory_space<vmem>>, vector<8x128xf32>
    %cst = arith.constant 0.000000e+00 : f32
    %6 = vector.broadcast %cst : f32 to vector<8x128xf32>
    %7 = arith.cmpf ogt, %5, %6 : vector<8x128xf32>
    %cst_3 = arith.constant 1.000000e+00 : f32
    %8 = vector.broadcast %cst_3 : f32 to vector<8x128xf32>
    %9 = arith.select %7, %5, %8 : vector<8x128xi1>, vector<8x128xf32>
    %cst_4 = arith.constant 1.000000e+00 : f32
    %10 = vector.broadcast %cst_4 : f32 to vector<8x128xf32>
    %11 = arith.cmpf olt, %5, %10 : vector<8x128xf32>
    %cst_5 = arith.constant 1.000000e+00 : f32
    %12 = vector.broadcast %cst_5 : f32 to vector<8x128xf32>
    %13 = arith.subf %12, %5 : vector<8x128xf32>
    %cst_6 = arith.constant 1.000000e+00 : f32
    %14 = vector.broadcast %cst_6 : f32 to vector<8x128xf32>
    %15 = arith.select %11, %13, %14 : vector<8x128xi1>, vector<8x128xf32>
    %16 = math.log %9 : vector<8x128xf32>
    %17 = arith.mulf %5, %16 : vector<8x128xf32>
    %cst_7 = arith.constant 1.000000e+00 : f32
    %18 = vector.broadcast %cst_7 : f32 to vector<8x128xf32>
    %19 = arith.subf %18, %5 : vector<8x128xf32>
    %20 = math.log %15 : vector<8x128xf32>
    %21 = arith.mulf %19, %20 : vector<8x128xf32>
    %22 = arith.addf %17, %21 : vector<8x128xf32>
    %cst_8 = arith.constant 0.000000e+00 : f32
    %23 = vector.broadcast %cst_8 : f32 to vector<8x128xf32>
    %24 = arith.subf %23, %22 : vector<8x128xf32>
    %c0_9 = arith.constant 0 : index
    %c0_10 = arith.constant 0 : index
    %25 = vector.load %arg5[%c0_9, %c0_10] : memref<8x128xf32, #tpu.memory_space<vmem>>, vector<8x128xf32>
    %26 = arith.addf %25, %24 : vector<8x128xf32>
    %c0_11 = arith.constant 0 : index
    %c0_12 = arith.constant 0 : index
    %27 = vector.load %arg5[%c0_11, %c0_12] : memref<8x128xf32, #tpu.memory_space<vmem>>, vector<8x128xf32>
    tpu.vector_store %arg5[%c0_11, %c0_12], %26 {strides = array<i32>} : memref<8x128xf32, #tpu.memory_space<vmem>>, vector<8x128xf32>,
    %c0_13 = arith.constant 0 : index
    %c0_14 = arith.constant 0 : index
    %28 = vector.load %arg6[%c0_13, %c0_14] : memref<8x128xf32, #tpu.memory_space<vmem>>, vector<8x128xf32>
    %29 = arith.addf %28, %5 : vector<8x128xf32>
    %c0_15 = arith.constant 0 : index
    %c0_16 = arith.constant 0 : index
    %30 = vector.load %arg6[%c0_15, %c0_16] : memref<8x128xf32, #tpu.memory_space<vmem>>, vector<8x128xf32>
    tpu.vector_store %arg6[%c0_15, %c0_16], %29 {strides = array<i32>} : memref<8x128xf32, #tpu.memory_space<vmem>>, vector<8x128xf32>,
    %c0_i32_17 = arith.constant 0 : i32
    %31 = arith.cmpi eq, %arg1, %c0_i32_17 : i32
    %c0_i32_18 = arith.constant 0 : i32
    %32 = arith.cmpi eq, %arg2, %c0_i32_18 : i32
    %33 = arith.andi %31, %32 : i1
    %34 = arith.extui %33 : i1 to i32
    %c0_i32_19 = arith.constant 0 : i32
    %35 = arith.cmpi ne, %34, %c0_i32_19 : i32
    scf.if %35 {
      %c0_20 = arith.constant 0 : index
      %c0_21 = arith.constant 0 : index
      %36 = vector.load %arg5[%c0_20, %c0_21] : memref<8x128xf32, #tpu.memory_space<vmem>>, vector<8x128xf32>
      %37 = vector.shape_cast %36 : vector<8x128xf32> to vector<1x8x128xf32>
      %cst_22 = arith.constant dense<0.000000e+00> : vector<1xf32>
      %38 = vector.multi_reduction <add>, %37, %cst_22 [1, 2] : vector<1x8x128xf32> to vector<1xf32>
      %39 = vector.shape_cast %38 : vector<1xf32> to vector<1x1x1xf32>
      %40 = vector.extract %39[0, 0, 0] : f32 from vector<1x1x1xf32>
      %c0_23 = arith.constant 0 : index
      %c0_24 = arith.constant 0 : index
      %41 = vector.load %arg6[%c0_23, %c0_24] : memref<8x128xf32, #tpu.memory_space<vmem>>, vector<8x128xf32>
      %42 = vector.shape_cast %41 : vector<8x128xf32> to vector<1x8x128xf32>
      %cst_25 = arith.constant dense<0.000000e+00> : vector<1xf32>
      %43 = vector.multi_reduction <add>, %42, %cst_25 [1, 2] : vector<1x8x128xf32> to vector<1xf32>
      %44 = vector.shape_cast %43 : vector<1xf32> to vector<1x1x1xf32>
      %45 = vector.extract %44[0, 0, 0] : f32 from vector<1x1x1xf32>
      %46 = tpu.iota {dimensions = array<i32: 1>} : vector<8x128xi32>
      %47 = tpu.iota {dimensions = array<i32: 0>} : vector<8x128xi32>
      %c0_i32_26 = arith.constant 0 : i32
      %48 = vector.broadcast %c0_i32_26 : i32 to vector<8x128xi32>
      %49 = arith.cmpi eq, %47, %48 : vector<8x128xi32>
      %c0_i32_27 = arith.constant 0 : i32
      %50 = vector.broadcast %c0_i32_27 : i32 to vector<8x128xi32>
      %51 = arith.cmpi eq, %46, %50 : vector<8x128xi32>
      %52 = arith.andi %49, %51 : vector<8x128xi1>
      %c0_i32_28 = arith.constant 0 : i32
      %53 = vector.broadcast %c0_i32_28 : i32 to vector<8x128xi32>
      %54 = arith.cmpi eq, %47, %53 : vector<8x128xi32>
      %c1_i32 = arith.constant 1 : i32
      %55 = vector.broadcast %c1_i32 : i32 to vector<8x128xi32>
      %56 = arith.cmpi eq, %46, %55 : vector<8x128xi32>
      %57 = arith.andi %54, %56 : vector<8x128xi1>
      %cst_29 = arith.constant 0.000000e+00 : f32
      %58 = vector.broadcast %45 : f32 to vector<8x128xf32>
      %59 = vector.broadcast %cst_29 : f32 to vector<8x128xf32>
      %60 = arith.select %57, %58, %59 : vector<8x128xi1>, vector<8x128xf32>
      %61 = vector.broadcast %40 : f32 to vector<8x128xf32>
      %62 = arith.select %52, %61, %60 : vector<8x128xi1>, vector<8x128xf32>
      %c0_30 = arith.constant 0 : index
      %c0_31 = arith.constant 0 : index
      %63 = vector.load %arg4[%c0_30, %c0_31] : memref<8x128xf32, #tpu.memory_space<vmem>>, vector<8x128xf32>
      tpu.vector_store %arg4[%c0_30, %c0_31], %62 {strides = array<i32>} : memref<8x128xf32, #tpu.memory_space<vmem>>, vector<8x128xf32>,
    } else {
    }
    return
  }
  func.func @transform_0(%arg0: i32, %arg1: i32, %arg2: i32) -> (i32, i32) {
    %c1_i32 = arith.constant 1 : i32
    %0 = arith.muli %arg0, %c1_i32 : i32
    %1 = arith.addi %0, %arg1 : i32
    %c0_i32 = arith.constant 0 : i32
    return %1, %arg2 : i32, i32
  }
  func.func @transform_1(%arg0: i32, %arg1: i32, %arg2: i32) -> (i32, i32) {
    %c0_i32 = arith.constant 0 : i32
    %c0_i32_0 = arith.constant 0 : i32
    return %arg0, %c0_i32 : i32, i32
  }
}

</mosaic_0001>

<llo_original>
// kernel: tpu_custom_call.1
$region0: #{tpu_custom_call.1}
  #allocation0 [shape = 'u32[]', space=smem, size = 0x4, offset = 0x4, fixed_abs, tag = 'smem constant byte address 0x4 - core index']
  #allocation1 [shape = 'u32[144,128]{1,0:T(1,128)}', space=vmem, size = 0x12000, scoped, tag = 'internal scratch']
  #allocation2 [shape = 'f32[8,128]{1,0:T(8,128)}', space=vmem, size = 0x1000, scoped, tag = 'scratch operand']
  #allocation3 [shape = 'f32[8,128]{1,0:T(8,128)}', space=vmem, size = 0x1000, scoped, tag = 'scratch operand']
  %s0 = inlined_call_operand.hbm [shape: f32[16,128], index: 0, kind: input, shape index: {}]
  %s1 = inlined_call_operand.hbm [shape: f32[16,128], index: 1, kind: output, shape index: {}]
  %s2 = sld [smem:[#allocation0]]
  $region49: #{tpu_custom_call.1} parent=0
    _
  %s4 = ssub.s32 1, %s2
  %s5 = scalar_select 0, %s4, %s2
  $region1: #{tpu_custom_call.1} parent=0
    #allocation4 [shape = 'u8[8192]{0}', space=vmem, size = 0x2000, scoped, tag = 'input window, operand 0']
    #allocation5 [shape = 's32[2]{0}', space=sflag, size = 0x8, scoped, tag = 'scoped memory for tpu_custom_call.1']
    #allocation6 [shape = 's32[2]{0}', space=sflag, size = 0x8, scoped, tag = 'scoped memory for tpu_custom_call.1']
    #allocation7 [shape = 'u8[8192]{0}', space=vmem, size = 0x2000, scoped, tag = 'output window, operand 0']
    %6 = vsyncpa [#allocation5], 0
    %s7 = scalar_lea.sflag [#allocation5], 1
    %8 = vsyncpa %s7, 0
    %9 = vsyncpa [#allocation6], 0
    %s10 = scalar_lea.sflag [#allocation6], 1
    %11 = vsyncpa %s10, 0
    loop: start=0, step=1, limit=4
    $region2: #{tpu_custom_call.1} parent=1 // loop_pre_header
      _
    $region3: #{tpu_custom_call.1} parent=1 // loop_header
      %s13 = sphi 0, %s17
      %p14 = scmp.ge.s32.totalorder %s13, 4
      %s20 = sphi 0, %s39
      %s21 = sphi 0, %s35
      %s22 = sphi 0, %s31
      %s23 = sphi 0, %s20
      %s24 = sphi 0, %s21
      %s25 = sphi 0, %s22
      %s26 = sphi 0, %s23
      %s27 = sphi 0, %s24
      %s28 = sphi 0, %s25
      %s46 = sphi 0, %s48
      %s49 = sphi 0, %s46
      %s50 = sphi 0, %s49
      %s66 = sphi 0, %s50
      %s72 = sphi 0, %s74
      %s75 = sphi 0, %s72
      %s76 = sphi 0, %s75
      %s92 = sphi 0, %s76
    $region4: #{tpu_custom_call.1} parent=1 // loop_header_branch
      %16 = sbr.rel (%p14) target = $region8
    $region5: #{tpu_custom_call.1} parent=1 // loop_body
      %s18 = ssub.s32 %s13, 1
      %s19 = ssub.s32 %s13, 2
      %s29 = sadd.s32 1, %s22
      %p30 = scmp.ge.s32.totalorder %s29, 1
      %s31 = scalar_select %p30, 0, %s29
      %s32 = sadd.s32 1, %s21
      %s33 = scalar_select %p30, %s32, %s21
      %p34 = scmp.ge.s32.totalorder %s33, 1
      %s35 = scalar_select %p34, 0, %s33
      %s36 = sadd.s32 1, %s20
      %s37 = scalar_select %p34, %s36, %s20
      %p38 = scmp.ge.s32.totalorder %s37, 2
      %s39 = scalar_select %p38, 0, %s37
      %s40 = sadd.s32 %s20, %s21
      %s41 = sadd.s32 %s39, %s35
      %s42 = ssub.s32 %s40, %s41
      %s43 = ssub.s32 %s22, %s31
      %s44 = sor.u32 %s42, %s43
      %p45 = scmp.eq.s32.totalorder %s44, 0
      %s47 = sadd.s32 %s46, 1
      %s48 = scalar_select %p45, %s46, %s47
      %p51 = pneg %p45
      %p52 = scmp.eq.s32.totalorder %s13, 1
      %p53 = por %p51, %p52
      %p54 = scmp.ne.s32.totalorder %s46, %s49
      %p55 = scmp.eq.s32.totalorder %s13, 0
      %p56 = por %p54, %p55
      %p57 = scmp.ne.s32.totalorder %s46, %s49
      %p58 = scmp.eq.s32.totalorder %s18, 1
      %p59 = por %p57, %p58
      %p60 = scmp.ne.s32.totalorder %s49, %s50
      %p61 = scmp.eq.s32.totalorder %s18, 0
      %p62 = por %p60, %p61
      %p63 = scmp.ne.s32.totalorder %s49, %s50
      %p64 = scmp.eq.s32.totalorder %s19, 1
      %p65 = por %p63, %p64
      %p67 = scmp.ne.s32.totalorder %s50, %s66
      %p68 = scmp.eq.s32.totalorder %s19, 0
      %p69 = por %p67, %p68
      %s70 = ssub.s32 %s20, %s39
      %p71 = scmp.eq.s32.totalorder %s70, 0
      %s73 = sadd.s32 %s72, 1
      %s74 = scalar_select %p71, %s72, %s73
      %p77 = pneg %p71
      %p78 = scmp.eq.s32.totalorder %s13, 1
      %p79 = por %p77, %p78
      %p80 = scmp.ne.s32.totalorder %s72, %s75
      %p81 = scmp.eq.s32.totalorder %s13, 0
      %p82 = por %p80, %p81
      %p83 = scmp.ne.s32.totalorder %s72, %s75
      %p84 = scmp.eq.s32.totalorder %s18, 1
      %p85 = por %p83, %p84
      %p86 = scmp.ne.s32.totalorder %s75, %s76
      %p87 = scmp.eq.s32.totalorder %s18, 0
      %p88 = por %p86, %p87
      %p89 = scmp.ne.s32.totalorder %s75, %s76
      %p90 = scmp.eq.s32.totalorder %s19, 1
      %p91 = por %p89, %p90
      %p93 = scmp.ne.s32.totalorder %s76, %s92
      %p94 = scmp.eq.s32.totalorder %s19, 0
      %p95 = por %p93, %p94
      %p96 = scmp.le.s32.totalorder 1, %s13
      %p97 = scmp.lt.s32.totalorder %s13, 3
      %p98 = pnand %p96, %p97
      %p99 = pneg %p98
      // Predicated region
      $region9: #{tpu_custom_call.1} parent=5 // pred_check
        _
      $region10: #{tpu_custom_call.1} parent=5 // pred_check_branch
        %101 = sbr.rel (%p98) target = $region12
      $region11: #{tpu_custom_call.1} parent=5 // pred_region
        %s102 = ssub.s32 %s13, 1
      $region12: #{tpu_custom_call.1} parent=5 // pred_fallthru
        _
      %p103 = scmp.lt.s32.totalorder %s13, 2
      // Predicated region
      $region13: #{tpu_custom_call.1} parent=5 // pred_check
        %p104 = pneg %p103
      $region14: #{tpu_custom_call.1} parent=5 // pred_check_branch
        %106 = sbr.rel (%p104) target = $region16
      $region15: #{tpu_custom_call.1} parent=5 // pred_region
        // Predicated region
        $region17: #{tpu_custom_call.1} parent=15 // pred_check
          %p107 = pneg %p56
        $region18: #{tpu_custom_call.1} parent=15 // pred_check_branch
          %109 = sbr.rel (%p107) target = $region20
        $region19: #{tpu_custom_call.1} parent=15 // pred_region
          %s110 = sand.u32 %s46, 1
          %s111 = scalar_lea.sflag [#allocation5], %s110
          %s112 = sand.u32 %s46, 1
          %s113 = smul.addr %s112, 8
          %s114 = scalar_lea.vmem [#allocation4], %s113
          %s115 = sadd.s32 %s20, %s21
          %s117 = ssub.s32 128, 128
          %118 = vsyncadd %s111, %s117
          %s119 = sadd.s32 %s22, %s115
          %s120 = smul.addr %s119, 128
          %s121 = scalar_lea.hbm %s0, %s120
          %s123 = sshll.u32 %s114, 4
          %s124 = int_to_ptr.vmem [resolvable:$true] %s123
          %126 = dma.hbm_to_vmem [thread:$0]  %s121, 128, %s124, %s111
        $region20: #{tpu_custom_call.1} parent=15 // pred_fallthru
          _
      $region16: #{tpu_custom_call.1} parent=5 // pred_fallthru
        _
      %p127 = scmp.le.s32.totalorder 1, %s13
      %p128 = scmp.lt.s32.totalorder %s13, 3
      %p129 = pnand %p127, %p128
      %p130 = pneg %p129
      // Predicated region
      $region21: #{tpu_custom_call.1} parent=5 // pred_check
        _
      $region22: #{tpu_custom_call.1} parent=5 // pred_check_branch
        %132 = sbr.rel (%p129) target = $region24
      $region23: #{tpu_custom_call.1} parent=5 // pred_region
        %s133 = ssub.s32 %s13, 1
        %s134 = sand.u32 %s49, 1
        %s135 = scalar_lea.sflag [#allocation5], %s134
        %s136 = sand.u32 %s49, 1
        %s137 = smul.addr %s136, 8
        %s138 = scalar_lea.vmem [#allocation4], %s137
        // Predicated region
        $region25: #{tpu_custom_call.1} parent=23 // pred_check
          %p139 = pneg %p62
        $region26: #{tpu_custom_call.1} parent=23 // pred_check_branch
          %141 = sbr.rel (%p139) target = $region28
        $region27: #{tpu_custom_call.1} parent=23 // pred_region
          %142 = dma.done %s135, 128
        $region28: #{tpu_custom_call.1} parent=23 // pred_fallthru
          _
        %s143 = sand.u32 %s49, 1
        %s144 = scalar_lea.sflag [#allocation5], %s143
        %s145 = sand.u32 %s49, 1
        %s146 = smul.addr %s145, 8
        %s147 = scalar_lea.vmem [#allocation4], %s146
        %p148 = pneg %p62
        %p149 = pneg %p59
        %p150 = pneg %p88
        %p151 = pneg %p85
        %s152 = sand.u32 %s75, 1
        %s153 = scalar_lea.sflag [#allocation6], %s152
        %s154 = sand.u32 %s75, 1
        %s155 = smul.addr %s154, 8
        %s156 = scalar_lea.vmem [#allocation7], %s155
        %s157 = sadd.s32 %s23, %s24
        %p158 = scmp.eq.s32.totalorder %s24, 0
        %p159 = scmp.eq.s32.totalorder %s25, 0
        %p160 = pnand %p158, %p159
        %p161 = pneg %p160
        // Predicated region
        $region29: #{tpu_custom_call.1} parent=23 // pred_check
          _
        $region30: #{tpu_custom_call.1} parent=23 // pred_check_branch
          %163 = sbr.rel (%p160) target = $region32
        $region31: #{tpu_custom_call.1} parent=23 // pred_region
          %164 = vst [vmem:[#allocation2] sm:$0xff] 0.0
          %165 = vst [vmem:[#allocation3] sm:$0xff] 0.0
        $region32: #{tpu_custom_call.1} parent=23 // pred_fallthru
          _
        %v166 = vld [vmem:[%s138] sm:$0xff]
        %vm167 = vcmp.gt.f32.partialorder %v166, 0.0
        %v168 = vsel %vm167, %v166, 1.0
        %vm169 = vcmp.lt.f32.partialorder %v166, 1.0
        %v170 = vsub.f32 1.0, %v166
        %v171 = vsel %vm169, %v170, 1.0
        %v172 = vlog2.pop %v168
        %v173 = vmul.f32 %v172, 0.6931472
        %v174 = vmul.f32 %v166, %v173
        %v175 = vlog2.pop %v171
        %v176 = vmul.f32 %v175, 0.6931472
        %v177 = vmul.f32 %v170, %v176
        %v178 = vadd.f32 %v174, %v177
        %v179 = vsub.f32 0.0, %v178
        %v180 = vld [vmem:[#allocation2] sm:$0xff]
        %v181 = vadd.f32 %v180, %v179
        %182 = vst [vmem:[#allocation2] sm:$0xff] %v181
        %v183 = vld [vmem:[#allocation3] sm:$0xff]
        %v184 = vadd.f32 %v183, %v166
        %185 = vst [vmem:[#allocation3] sm:$0xff] %v184
        // Predicated region
        $region33: #{tpu_custom_call.1} parent=23 // pred_check
          _
        $region34: #{tpu_custom_call.1} parent=23 // pred_check_branch
          %187 = sbr.rel (%p160) target = $region36
        $region35: #{tpu_custom_call.1} parent=23 // pred_region
          %v188 = vld [vmem:[#allocation2] sm:$0xff]
          %189 = vadd.xlane.f32.xlu0 %v188
          %v190 = vpop.xlane.xlu0 %189
          %v191 = vrot.slane %v190, 4
          %v192 = vadd.f32 %v190, %v191
          %v193 = vrot.slane %v192, 2
          %v194 = vadd.f32 %v192, %v193
          %v195 = vrot.slane %v194, 1
          %v196 = vadd.f32 %v194, %v195
          %s197 = vtos %v196
          %v198 = vld [vmem:[#allocation3] sm:$0xff]
          %199 = vadd.xlane.f32.xlu0 %v198
          %v200 = vpop.xlane.xlu0 %199
          %v201 = vrot.slane %v200, 4
          %v202 = vadd.f32 %v200, %v201
          %v203 = vrot.slane %v202, 2
          %v204 = vadd.f32 %v202, %v203
          %v205 = vrot.slane %v204, 1
          %v206 = vadd.f32 %v204, %v205
          %s207 = vtos %v206
          %v208 = vlaneseq
          %v209 = vand.u32 %v208, 127
          %v210 = vlaneseq
          %v211 = vshrl.u32 %v210, 7
          %vm212 = vcmp.eq.s32.totalorder %v211, 0
          %vm213 = vcmp.eq.s32.totalorder %v209, 0
          %vm214 = vmand %vm212, %vm213
          %vm215 = vcmp.eq.s32.totalorder %v209, 1
          %vm216 = vmand %vm212, %vm215
          %v217 = vstv %s207
          %v218 = vsel %vm216, %v217, 0.0
          %v219 = vstv %s197
          %v220 = vsel %vm214, %v219, %v218
          %221 = vst [vmem:[%s156] sm:$0xff] %v220
        $region36: #{tpu_custom_call.1} parent=23 // pred_fallthru
          _
        %s222 = sand.u32 %s75, 1
        %s223 = scalar_lea.sflag [#allocation6], %s222
        %s224 = sand.u32 %s75, 1
        %s225 = smul.addr %s224, 8
        %s226 = scalar_lea.vmem [#allocation7], %s225
        // Predicated region
        $region37: #{tpu_custom_call.1} parent=23 // pred_check
          %p227 = pneg %p85
        $region38: #{tpu_custom_call.1} parent=23 // pred_check_branch
          %229 = sbr.rel (%p227) target = $region40
        $region39: #{tpu_custom_call.1} parent=23 // pred_region
          %s231 = ssub.s32 128, 128
          %232 = vsyncadd %s223, %s231
          %s233 = smul.addr %s23, 128
          %s234 = scalar_lea.hbm %s1, %s233
          %s236 = sshll.u32 %s226, 4
          %s237 = int_to_ptr.vmem [resolvable:$true] %s236
          %239 = dma.vmem_to_hbm [thread:$0]  %s237, 128, %s234, %s223
        $region40: #{tpu_custom_call.1} parent=23 // pred_fallthru
          _
      $region24: #{tpu_custom_call.1} parent=5 // pred_fallthru
        _
      %p240 = scmp.le.s32.totalorder 2, %s13
      // Predicated region
      $region41: #{tpu_custom_call.1} parent=5 // pred_check
        %p241 = pneg %p240
      $region42: #{tpu_custom_call.1} parent=5 // pred_check_branch
        %243 = sbr.rel (%p241) target = $region44
      $region43: #{tpu_custom_call.1} parent=5 // pred_region
        %s244 = ssub.s32 %s13, 2
        // Predicated region
        $region45: #{tpu_custom_call.1} parent=43 // pred_check
          %p245 = pneg %p91
        $region46: #{tpu_custom_call.1} parent=43 // pred_check_branch
          %247 = sbr.rel (%p245) target = $region48
        $region47: #{tpu_custom_call.1} parent=43 // pred_region
          %s248 = sand.u32 %s76, 1
          %s249 = scalar_lea.sflag [#allocation6], %s248
          %s250 = sand.u32 %s76, 1
          %s251 = smul.addr %s250, 8
          %s252 = scalar_lea.vmem [#allocation7], %s251
          %253 = dma.done %s249, 128
        $region48: #{tpu_custom_call.1} parent=43 // pred_fallthru
          _
      $region44: #{tpu_custom_call.1} parent=5 // pred_fallthru
        _
    $region6: #{tpu_custom_call.1} parent=1 // loop_footer
      %s17 = sadd.s32 1, %s13
    $region7: #{tpu_custom_call.1} parent=1 // loop_footer_branch
      %12 = sbr.rel target = $region3
    $region8: #{tpu_custom_call.1} parent=1 // loop_exit
      _
    %254 = vsyncpa [#allocation5], 1
    %s255 = scalar_lea.sflag [#allocation5], 1
    %256 = vsyncpa %s255, 1
    %257 = vsyncpa [#allocation6], 1
    %s258 = scalar_lea.sflag [#allocation6], 1
    %259 = vsyncpa %s258, 1

</llo_original>
